<compile_context>
chip_gen: v7x
topology: tpu7x:2x2x1
jax: 0.10.0
libtpu: 0.0.40
codegen_flags: <defaults>
</compile_context>

<pallas_src>
import math

import jax
import jax.numpy as jnp
from jax.experimental import pallas as pl
from jax.experimental.pallas import tpu as pltpu

_LANES = 128
_TM_MAX = 512          # max rows per conv1/attention tile


def _round_up(x, m):
    return ((x + m - 1) // m) * m


# ----------------------------------------------------------------------------- kernels

def _conv1_bn_kernel(x_ref, w_ref, shift_ref, o_ref):
    """(tm, Cin_p) bf16 @ (Cin_p, Cmid_p) bf16 on the MXU, + folded-BN shift (f32)."""
    acc = jnp.dot(x_ref[...], w_ref[...], preferred_element_type=jnp.float32)
    o_ref[...] = (acc + shift_ref[...]).astype(o_ref.dtype)


def _conv1_bn_att_kernel(x_ref, w_ref, shift_ref, y_ref, wax_ref, way_ref, ab_ref, o_ref):
    """Fused ABF path for one row tile:
       xm = BN(conv1(x)); z = sigmoid(att([xm|y])); out = xm*z0 + y*z1."""
    xm = jnp.dot(x_ref[...], w_ref[...], preferred_element_type=jnp.float32) + shift_ref[...]
    y = y_ref[...].astype(jnp.float32)
    logits = (jnp.dot(xm.astype(jnp.bfloat16), wax_ref[...],
                      preferred_element_type=jnp.float32)
              + jnp.dot(y_ref[...], way_ref[...], preferred_element_type=jnp.float32)
              + ab_ref[...])
    z = pl.reciprocal(1.0 + jnp.exp(-logits), approx=True)      # sigmoid, (tm, 2), EUP
    o_ref[...] = (xm * z[:, 0:1] + y * z[:, 1:2]).astype(o_ref.dtype)


def _conv2_3x3_kernel(*refs):
    """3x3 conv + folded-BN shift for TH output rows of one image.

    refs = (row_0, ..., row_{TH+1}, w_taps, shift, out) where row_s is padded image row
    (ht*TH + s) of the spatially zero-padded NHWC activation, shape (1, 1, W+2, Cmid_p).
    w_taps: (9, Cmid_p, Cout_p) bf16, shift: (1, Cout_p) f32, out: (1, TH, W, Cout_p) f32.
    """
    *row_refs, w_ref, shift_ref, o_ref = refs
    th = o_ref.shape[1]
    w_out = o_ref.shape[2]
    co_p = o_ref.shape[3]
    shift = shift_ref[...]
    for r in range(th):
        acc = jnp.zeros((w_out, co_p), jnp.float32)
        for kh in range(3):
            row = row_refs[r + kh][0, 0]                 # (W+2, Cmid_p) bf16
            for kw in range(3):
                acc = acc + jnp.dot(row[kw:kw + w_out, :], w_ref[kh * 3 + kw],
                                    preferred_element_type=jnp.float32)
        o_ref[0, r] = acc + shift


# ----------------------------------------------------------------------- pallas wrappers

def _row_tile(m):
    """Up to 512 rows per tile, multiple of 8, and >=2 grid steps whenever m allows."""
    half = -(-m // 2)
    return max(8, min(_TM_MAX, _round_up(half, 8)))


def conv1_bn(x_rows, w, shift):
    """(M, Cin_p) bf16 rows -> (M, Cmid_p) bf16, 1x1 conv + folded BN."""
    m, k = x_rows.shape
    cm_p = w.shape[1]
    tm = _row_tile(m)
    return pl.pallas_call(
        _conv1_bn_kernel,
        out_shape=jax.ShapeDtypeStruct((m, cm_p), jnp.bfloat16),
        grid=(pl.cdiv(m, tm),),
        in_specs=[
            pl.BlockSpec((tm, k), lambda i: (i, 0)),
            pl.BlockSpec((k, cm_p), lambda i: (0, 0)),
            pl.BlockSpec((1, cm_p), lambda i: (0, 0)),
        ],
        out_specs=pl.BlockSpec((tm, cm_p), lambda i: (i, 0)),
        compiler_params=pltpu.CompilerParams(dimension_semantics=("parallel",)),
    )(x_rows, w, shift)


def conv1_bn_att(x_rows, w, shift, y_rows, wax, way, ab):
    """Fused 1x1 conv + folded BN + ABF attention fusion. Returns (M, Cmid_p) bf16."""
    m, k = x_rows.shape
    cm_p = w.shape[1]
    tm = _row_tile(m)
    return pl.pallas_call(
        _conv1_bn_att_kernel,
        out_shape=jax.ShapeDtypeStruct((m, cm_p), jnp.bfloat16),
        grid=(pl.cdiv(m, tm),),
        in_specs=[
            pl.BlockSpec((tm, k), lambda i: (i, 0)),
            pl.BlockSpec((k, cm_p), lambda i: (0, 0)),
            pl.BlockSpec((1, cm_p), lambda i: (0, 0)),
            pl.BlockSpec((tm, cm_p), lambda i: (i, 0)),
            pl.BlockSpec((cm_p, 2), lambda i: (0, 0)),
            pl.BlockSpec((cm_p, 2), lambda i: (0, 0)),
            pl.BlockSpec((1, 2), lambda i: (0, 0)),
        ],
        out_specs=pl.BlockSpec((tm, cm_p), lambda i: (i, 0)),
        compiler_params=pltpu.CompilerParams(dimension_semantics=("parallel",)),
    )(x_rows, w, shift, y_rows, wax, way, ab)


def conv2_3x3(x_nhwc, w_taps, shift):
    """3x3 / stride 1 / pad 1 conv + folded BN, NHWC in (bf16), NHWC out (f32).

    The activation is spatially zero-padded once (tiny copy); the kernel gets TH+2
    shifted single-row views of that padded array, so no im2col matrix ever hits HBM.
    """
    n, h, w_img, cm_p = x_nhwc.shape
    co_p = w_taps.shape[-1]
    th = min(8, h)
    n_ht = pl.cdiv(h, th)
    hp = n_ht * th + 2                       # covers all tiles + halo, all reads in-bounds
    xp = jnp.pad(x_nhwc, ((0, 0), (1, hp - h - 1), (1, 1), (0, 0)))
    wp = w_img + 2

    row_specs = [
        pl.BlockSpec((1, 1, wp, cm_p), lambda ni, hi, s=s: (ni, hi * th + s, 0, 0))
        for s in range(th + 2)
    ]
    out = pl.pallas_call(
        _conv2_3x3_kernel,
        out_shape=jax.ShapeDtypeStruct((n, n_ht * th, w_img, co_p), jnp.float32),
        grid=(n, n_ht),
        in_specs=row_specs + [
            pl.BlockSpec((9, cm_p, co_p), lambda ni, hi: (0, 0, 0)),
            pl.BlockSpec((1, co_p), lambda ni, hi: (0, 0)),
        ],
        out_specs=pl.BlockSpec((1, th, w_img, co_p), lambda ni, hi: (ni, hi, 0, 0)),
        compiler_params=pltpu.CompilerParams(
            dimension_semantics=("parallel", "parallel")),
    )(*([xp] * (th + 2)), w_taps, shift)
    return out[:, :h]


# -------------------------------------------------------------------------- JAX glue ops

def _nearest_resize_nhwc(x, out_h, out_w):
    """torch F.interpolate(mode='nearest'): src = floor(dst * in/out); pure gather, NHWC."""
    n, h, w, c = x.shape
    if out_h != h:
        x = jnp.take(x, (jnp.arange(out_h) * h) // out_h, axis=1)
    if out_w != w:
        x = jnp.take(x, (jnp.arange(out_w) * w) // out_w, axis=2)
    return x


# --------------------------------------------------------------------------- parameters

def _kaiming_uniform(key, shape, fan_in, a=1.0):
    gain = math.sqrt(2.0 / (1.0 + a * a))
    bound = gain * math.sqrt(3.0 / max(fan_in, 1))
    return jax.random.uniform(key, shape, jnp.float32, minval=-bound, maxval=bound)


def _init_bn(channels):
    return dict(gamma=jnp.ones((channels,), jnp.float32),
                beta=jnp.zeros((channels,), jnp.float32),
                mean=jnp.zeros((channels,), jnp.float32),
                var=jnp.ones((channels,), jnp.float32),
                eps=1e-5)


def _fold_bn(bn):
    scale = bn["gamma"] / jnp.sqrt(bn["var"] + bn["eps"])
    shift = bn["beta"] - bn["mean"] * scale
    return scale, shift


def init_abf_params(key, in_channel, mid_channel, out_channel, fuse):
    k1, k2, k3, k4 = jax.random.split(key, 4)
    cin_p = _round_up(in_channel, _LANES)
    cm_p = _round_up(mid_channel, _LANES)
    co_p = _round_up(out_channel, _LANES)
    p = dict(fuse=fuse, in_channel=in_channel, mid_channel=mid_channel,
             out_channel=out_channel, cin_p=cin_p, cm_p=cm_p, co_p=co_p)

    # conv1: 1x1, no bias, kaiming_uniform(a=1); BN scale folded into the columns.
    w1 = _kaiming_uniform(k1, (in_channel, mid_channel), fan_in=in_channel, a=1.0)
    s1, b1 = _fold_bn(_init_bn(mid_channel))
    w1 = w1 * s1[None, :]
    p["w1"] = jnp.pad(w1, ((0, cin_p - in_channel),
                           (0, cm_p - mid_channel))).astype(jnp.bfloat16)
    p["shift1"] = jnp.pad(b1, (0, cm_p - mid_channel)).reshape(1, cm_p)

    # conv2: 3x3, no bias, kaiming_uniform(a=1); stored as 9 per-tap (Cmid_p, Cout_p) slabs.
    w2 = _kaiming_uniform(k2, (3, 3, mid_channel, out_channel),
                          fan_in=9 * mid_channel, a=1.0)
    s2, b2 = _fold_bn(_init_bn(out_channel))
    w2 = w2 * s2[None, None, None, :]
    w2 = jnp.pad(w2, ((0, 0), (0, 0), (0, cm_p - mid_channel), (0, co_p - out_channel)))
    p["w2"] = w2.reshape(9, cm_p, co_p).astype(jnp.bfloat16)
    p["shift2"] = jnp.pad(b2, (0, co_p - out_channel)).reshape(1, co_p)

    if fuse:
        # att_conv: Conv2d(2*mid, 2, kernel_size=1, bias=True), PyTorch default init.
        fan_in = 2 * mid_channel
        wa = _kaiming_uniform(k3, (fan_in, 2), fan_in=fan_in, a=math.sqrt(5.0))
        b_bound = 1.0 / math.sqrt(fan_in)
        p["wa_x"] = jnp.pad(wa[:mid_channel],
                            ((0, cm_p - mid_channel), (0, 0))).astype(jnp.bfloat16)
        p["wa_y"] = jnp.pad(wa[mid_channel:],
                            ((0, cm_p - mid_channel), (0, 0))).astype(jnp.bfloat16)
        p["wa_b"] = jax.random.uniform(k4, (1, 2), jnp.float32, -b_bound, b_bound)
    return p


# ------------------------------------------------------------------------------ ABF / KD

def abf_forward(params, x, y=None, shape=None, out_shape=None, feature_type=None):
    """One ABF level. x: NCHW f32 feature map; y: NHWC channel-padded bf16 residual."""
    n, c, h, w = x.shape
    cin_p, cm_p = params["cin_p"], params["cm_p"]

    # NCHW -> channel-padded NHWC rows in bf16 (single layout pass, free reshape after).
    x_nhwc = jnp.transpose(x, (0, 2, 3, 1)).astype(jnp.bfloat16)
    if cin_p != c:
        x_nhwc = jnp.pad(x_nhwc, ((0, 0), (0, 0), (0, 0), (0, cin_p - c)))
    x_rows = x_nhwc.reshape(n * h * w, cin_p)

    if params["fuse"]:
        # Faithful to F.interpolate(y, (shape, w), mode='nearest').
        y_r = _nearest_resize_nhwc(y, shape, w)
        assert y_r.shape[1] == h, "fused ABF requires shape == current height (as in PyTorch)"
        y_rows = y_r.reshape(n * h * w, cm_p)
        x_rows = conv1_bn_att(x_rows, params["w1"], params["shift1"], y_rows,
                              params["wa_x"], params["wa_y"], params["wa_b"])
    else:
        x_rows = conv1_bn(x_rows, params["w1"], params["shift1"])

    x_mid = x_rows.reshape(n, h, w, cm_p)          # NHWC residual, bf16, padded channels

    # Faithful reference quirk: the *width* is compared with out_shape, but the nearest
    # resize changes only the *height* to out_shape (keeps width w).
    if out_shape is not None and w != out_shape:
        x_mid = _nearest_resize_nhwc(x_mid, out_shape, w)

    y_out = conv2_3x3(x_mid, params["w2"], params["shift2"])     # (n, h2, w, Cout_p) f32
    y_out = jnp.transpose(y_out[:, :, :, :params["out_channel"]], (0, 3, 1, 2))
    return y_out, x_mid


class ReviewKD:
    """JAX/Pallas re-implementation of the ReviewKD forward pass."""

    def __init__(self, in_channels, out_channels, shapes, out_shapes, feature_maps,
                 ft_type, *, key):
        self.shapes = shapes
        self.out_shapes = shapes if out_shapes is None else out_shapes
        self.feature_maps = feature_maps
        self.ft_type = ft_type
        mid_channel = min(512, in_channels[-1])
        abfs = []
        for idx, in_channel in enumerate(in_channels):
            key, sub = jax.random.split(key)
            abfs.append(init_abf_params(sub, in_channel, mid_channel, out_channels[idx],
                                        idx < len(in_channels) - 1))
        self.abfs = abfs[::-1]

    def __call__(self, x=None):
        if self.ft_type == "encoder":
            feats = self.feature_maps[::-1]
            insert_front = True
        elif self.ft_type == "decoder":
            feats = self.feature_maps
            insert_front = False
        else:
            raise ValueError(f"unknown ft_type: {self.ft_type}")

        results = []
        out_features, res_features = abf_forward(
            self.abfs[0], feats[0], out_shape=self.out_shapes[0],
            feature_type=self.ft_type)
        results.append(out_features)
        for feature, abf, shape, out_shape in zip(
                feats[1:], self.abfs[1:], self.shapes[1:], self.out_shapes[1:]):
            out_features, res_features = abf_forward(
                abf, feature, res_features, shape, out_shape, feature_type=self.ft_type)
            if insert_front:
                results.insert(0, out_features)
            else:
                results.append(out_features)
        return results


# ----------------------------------------------------------------------------------- main

if __name__ == "__main__":
    key = jax.random.PRNGKey(0)
    k_params, kf0, kf1, kf2 = jax.random.split(key, 4)

    B = 2
    in_channels = [4, 8, 16]          # mid_channel = min(512, 16) = 16
    out_channels = [8, 8, 8]
    # Encoder mode iterates feature_maps[::-1]; shapes/out_shapes follow that order.
    feature_maps = [
        jax.random.normal(kf0, (B, 4, 16, 16), dtype=jnp.float32),
        jax.random.normal(kf1, (B, 8, 8, 8), dtype=jnp.float32),
        jax.random.normal(kf2, (B, 16, 4, 4), dtype=jnp.float32),
    ]
    shapes = [4, 8, 16]
    out_shapes = [4, 8, 8]            # last level exercises the out_shape resize branch

    model = ReviewKD(in_channels, out_channels, shapes, out_shapes, feature_maps,
                     ft_type="encoder", key=k_params)
    results = model(None)
    jax.block_until_ready(results)

    expected = [(B, 8, 8, 16), (B, 8, 8, 8), (B, 8, 4, 4)]
    got = [tuple(r.shape) for r in results]
    assert got == expected, f"unexpected output shapes: {got}"
    assert all(bool(jnp.all(jnp.isfinite(r))) for r in results)
    print("KERNEL_OK")
</pallas_src>

<mosaic_0001>
module attributes {stable_mosaic.version = 11 : i64} {
  func.func @_conv1_bn_kernel(%arg0: i32, %arg1: memref<16x128xbf16, #tpu.memory_space<vmem>>, %arg2: memref<128x128xbf16, #tpu.memory_space<vmem>>, %arg3: memref<1x128xf32, #tpu.memory_space<vmem>>, %arg4: memref<16x128xbf16, #tpu.memory_space<vmem>>) attributes {dimension_semantics = [#tpu.dimension_semantics<parallel>], iteration_bounds = array<i64: 2>, scalar_prefetch = 0 : i64, scratch_operands = 0 : i64, tpu.core_type = #tpu.core_type<tc>, window_params = [{transform_indices = @transform_0, window_bounds = array<i64: 16, 128>}, {pipeline_mode = #tpu.pipeline_mode<synchronous>, transform_indices = @transform_1, window_bounds = array<i64: 128, 128>}, {pipeline_mode = #tpu.pipeline_mode<synchronous>, transform_indices = @transform_2, window_bounds = array<i64: 1, 128>}, {transform_indices = @transform_3, window_bounds = array<i64: 16, 128>}]} {
    %c0 = arith.constant 0 : index
    %c0_0 = arith.constant 0 : index
    %0 = vector.load %arg1[%c0, %c0_0] : memref<16x128xbf16, #tpu.memory_space<vmem>>, vector<16x128xbf16>
    %c0_1 = arith.constant 0 : index
    %c0_2 = arith.constant 0 : index
    %1 = vector.load %arg2[%c0_1, %c0_2] : memref<128x128xbf16, #tpu.memory_space<vmem>>, vector<128x128xbf16>
    %cst = arith.constant dense<0.000000e+00> : vector<16x128xf32>
    %2 = tpu.matmul %0, %1, %cst {dimension_numbers = #tpu.dot_dimension_numbers<[1], [0], [0], [1], [0, 0, 1, 1], [], []>} : vector<16x128xbf16>, vector<128x128xbf16>, vector<16x128xf32> -> vector<16x128xf32>
    %c0_3 = arith.constant 0 : index
    %c0_4 = arith.constant 0 : index
    %3 = vector.load %arg3[%c0_3, %c0_4] : memref<1x128xf32, #tpu.memory_space<vmem>>, vector<1x128xf32>
    %4 = vector.broadcast %3 : vector<1x128xf32> to vector<16x128xf32>
    %5 = arith.addf %2, %4 : vector<16x128xf32>
    %6 = arith.truncf %5 : vector<16x128xf32> to vector<16x128xbf16>
    %c0_5 = arith.constant 0 : index
    %c0_6 = arith.constant 0 : index
    %7 = vector.load %arg4[%c0_5, %c0_6] : memref<16x128xbf16, #tpu.memory_space<vmem>>, vector<16x128xbf16>
    tpu.vector_store %arg4[%c0_5, %c0_6], %6 {strides = array<i32>} : memref<16x128xbf16, #tpu.memory_space<vmem>>, vector<16x128xbf16>,
    return
  }
  func.func @transform_0(%arg0: i32) -> (i32, i32) {
    %c0_i32 = arith.constant 0 : i32
    %c0_i32_0 = arith.constant 0 : i32
    return %arg0, %c0_i32 : i32, i32
  }
  func.func @transform_1(%arg0: i32) -> (i32, i32) {
    %c0_i32 = arith.constant 0 : i32
    %c0_i32_0 = arith.constant 0 : i32
    %c0_i32_1 = arith.constant 0 : i32
    return %c0_i32, %c0_i32_0 : i32, i32
  }
  func.func @transform_2(%arg0: i32) -> (i32, i32) {
    %c0_i32 = arith.constant 0 : i32
    %c0_i32_0 = arith.constant 0 : i32
    %c0_i32_1 = arith.constant 0 : i32
    return %c0_i32, %c0_i32_0 : i32, i32
  }
  func.func @transform_3(%arg0: i32) -> (i32, i32) {
    %c0_i32 = arith.constant 0 : i32
    %c0_i32_0 = arith.constant 0 : i32
    return %arg0, %c0_i32 : i32, i32
  }
}

</mosaic_0001>

<llo_original>
// kernel: tpu_custom_call.1
$region0: #{tpu_custom_call.1}
  #allocation0 [shape = 'u32[]', space=smem, size = 0x4, offset = 0x4, fixed_abs, tag = 'smem constant byte address 0x4 - core index']
  #allocation1 [shape = 'u32[144,128]{1,0:T(1,128)}', space=vmem, size = 0x12000, scoped, tag = 'internal scratch']
  %s0 = inlined_call_operand.hbm [shape: bf16[32,128], index: 0, kind: input, shape index: {}]
  %s1 = inlined_call_operand.hbm [shape: bf16[128,128], index: 1, kind: input, shape index: {}]
  %s2 = inlined_call_operand.vmem [shape: f32[1,128], index: 2, kind: input, shape index: {}]
  %s3 = inlined_call_operand.hbm [shape: bf16[32,128], index: 3, kind: output, shape index: {}]
  %s4 = sld [smem:[#allocation0]]
  $region53: #{tpu_custom_call.1} parent=0
    _
  %s6 = ssub.s32 1, %s4
  %s7 = scalar_select 0, %s6, %s4
  $region1: #{tpu_custom_call.1} parent=0
    #allocation2 [shape = 'u8[8192]{0}', space=vmem, size = 0x2000, scoped, tag = 'input window, operand 0']
    #allocation3 [shape = 's32[2]{0}', space=sflag, size = 0x8, scoped, tag = 'scoped memory for tpu_custom_call.1']
    #allocation4 [shape = 's32[2]{0}', space=sflag, size = 0x8, scoped, tag = 'scoped memory for tpu_custom_call.1']
    #allocation5 [shape = 'u8[32768]{0}', space=vmem, size = 0x8000, scoped, tag = 'input window, operand 1, single buffered']
    #allocation6 [shape = 's32[1]{0}', space=sflag, size = 0x4, scoped, tag = 'scoped memory for tpu_custom_call.1']
    #allocation7 [shape = 'u8[8192]{0}', space=vmem, size = 0x2000, scoped, tag = 'output window, operand 0']
    %8 = vsyncpa [#allocation3], 0
    %s9 = scalar_lea.sflag [#allocation3], 1
    %10 = vsyncpa %s9, 0
    %11 = vsyncpa [#allocation6], 0
    %12 = vsyncpa [#allocation4], 0
    %s13 = scalar_lea.sflag [#allocation4], 1
    %14 = vsyncpa %s13, 0
    loop: start=0, step=1, limit=4
    $region2: #{tpu_custom_call.1} parent=1 // loop_pre_header
      _
    $region3: #{tpu_custom_call.1} parent=1 // loop_header
      %s16 = sphi 0, %s20
      %p17 = scmp.ge.s32.totalorder %s16, 4
      %s26 = sphi 0, %s28
      %s29 = sphi 0, %s26
      %s30 = sphi 0, %s29
      %s46 = sphi 0, %s30
      %s50 = sphi 0, %s50
      %s52 = sphi 0, %s50
      %s53 = sphi 0, %s52
      %s67 = sphi 0, %s53
      %s71 = sphi 0, %s71
      %s73 = sphi 0, %s71
      %s74 = sphi 0, %s73
      %s88 = sphi 0, %s74
      %s94 = sphi 0, %s96
      %s97 = sphi 0, %s94
      %s98 = sphi 0, %s97
      %s114 = sphi 0, %s98
    $region4: #{tpu_custom_call.1} parent=1 // loop_header_branch
      %19 = sbr.rel (%p17) target = $region8
    $region5: #{tpu_custom_call.1} parent=1 // loop_body
      %s21 = ssub.s32 %s16, 1
      %s22 = ssub.s32 %s16, 2
      %s23 = sadd.s32 %s16, 1
      %s24 = ssub.s32 %s16, %s23
      %p25 = scmp.eq.s32.totalorder %s24, 0
      %s27 = sadd.s32 %s26, 1
      %s28 = scalar_select %p25, %s26, %s27
      %p31 = pneg %p25
      %p32 = scmp.eq.s32.totalorder %s16, 1
      %p33 = por %p31, %p32
      %p34 = scmp.ne.s32.totalorder %s26, %s29
      %p35 = scmp.eq.s32.totalorder %s16, 0
      %p36 = por %p34, %p35
      %p37 = scmp.ne.s32.totalorder %s26, %s29
      %p38 = scmp.eq.s32.totalorder %s21, 1
      %p39 = por %p37, %p38
      %p40 = scmp.ne.s32.totalorder %s29, %s30
      %p41 = scmp.eq.s32.totalorder %s21, 0
      %p42 = por %p40, %p41
      %p43 = scmp.ne.s32.totalorder %s29, %s30
      %p44 = scmp.eq.s32.totalorder %s22, 1
      %p45 = por %p43, %p44
      %p47 = scmp.ne.s32.totalorder %s30, %s46
      %p48 = scmp.eq.s32.totalorder %s22, 0
      %p49 = por %p47, %p48
      %s51 = sadd.s32 %s50, 1
      %p54 = scmp.eq.s32.totalorder %s16, 1
      %p55 = scmp.ne.s32.totalorder %s50, %s52
      %p56 = scmp.eq.s32.totalorder %s16, 0
      %p57 = por %p55, %p56
      %p58 = scmp.ne.s32.totalorder %s50, %s52
      %p59 = scmp.eq.s32.totalorder %s21, 1
      %p60 = por %p58, %p59
      %p61 = scmp.ne.s32.totalorder %s52, %s53
      %p62 = scmp.eq.s32.totalorder %s21, 0
      %p63 = por %p61, %p62
      %p64 = scmp.ne.s32.totalorder %s52, %s53
      %p65 = scmp.eq.s32.totalorder %s22, 1
      %p66 = por %p64, %p65
      %p68 = scmp.ne.s32.totalorder %s53, %s67
      %p69 = scmp.eq.s32.totalorder %s22, 0
      %p70 = por %p68, %p69
      %s72 = sadd.s32 %s71, 1
      %p75 = scmp.eq.s32.totalorder %s16, 1
      %p76 = scmp.ne.s32.totalorder %s71, %s73
      %p77 = scmp.eq.s32.totalorder %s16, 0
      %p78 = por %p76, %p77
      %p79 = scmp.ne.s32.totalorder %s71, %s73
      %p80 = scmp.eq.s32.totalorder %s21, 1
      %p81 = por %p79, %p80
      %p82 = scmp.ne.s32.totalorder %s73, %s74
      %p83 = scmp.eq.s32.totalorder %s21, 0
      %p84 = por %p82, %p83
      %p85 = scmp.ne.s32.totalorder %s73, %s74
      %p86 = scmp.eq.s32.totalorder %s22, 1
      %p87 = por %p85, %p86
      %p89 = scmp.ne.s32.totalorder %s74, %s88
      %p90 = scmp.eq.s32.totalorder %s22, 0
      %p91 = por %p89, %p90
      %s92 = ssub.s32 %s16, %s23
      %p93 = scmp.eq.s32.totalorder %s92, 0
      %s95 = sadd.s32 %s94, 1
      %s96 = scalar_select %p93, %s94, %s95
      %p99 = pneg %p93
      %p100 = scmp.eq.s32.totalorder %s16, 1
      %p101 = por %p99, %p100
      %p102 = scmp.ne.s32.totalorder %s94, %s97
      %p103 = scmp.eq.s32.totalorder %s16, 0
      %p104 = por %p102, %p103
      %p105 = scmp.ne.s32.totalorder %s94, %s97
      %p106 = scmp.eq.s32.totalorder %s21, 1
      %p107 = por %p105, %p106
      %p108 = scmp.ne.s32.totalorder %s97, %s98
      %p109 = scmp.eq.s32.totalorder %s21, 0
      %p110 = por %p108, %p109
      %p111 = scmp.ne.s32.totalorder %s97, %s98
      %p112 = scmp.eq.s32.totalorder %s22, 1
      %p113 = por %p111, %p112
      %p115 = scmp.ne.s32.totalorder %s98, %s114
      %p116 = scmp.eq.s32.totalorder %s22, 0
      %p117 = por %p115, %p116
      %p118 = scmp.le.s32.totalorder 1, %s16
      %p119 = scmp.lt.s32.totalorder %s16, 3
      %p120 = pnand %p118, %p119
      %p121 = pneg %p120
      // Predicated region
      $region9: #{tpu_custom_call.1} parent=5 // pred_check
        _
      $region10: #{tpu_custom_call.1} parent=5 // pred_check_branch
        %123 = sbr.rel (%p120) target = $region12
      $region11: #{tpu_custom_call.1} parent=5 // pred_region
        %s124 = ssub.s32 %s16, 1
        // Predicated region
        $region13: #{tpu_custom_call.1} parent=11 // pred_check
          %p125 = pneg %p63
        $region14: #{tpu_custom_call.1} parent=11 // pred_check_branch
          %127 = sbr.rel (%p125) target = $region16
        $region15: #{tpu_custom_call.1} parent=11 // pred_region
          %s129 = ssub.s32 1024, 1024
          %130 = vsyncadd [#allocation6], %s129
          %s131 = sshll.u32 [#allocation5], 4
          %s132 = int_to_ptr.vmem [resolvable:$true] %s131
          %137 = dma.hbm_to_vmem [thread:$0]  %s1, 1024, %s132, [#allocation6], 64, 64, 4
        $region16: #{tpu_custom_call.1} parent=11 // pred_fallthru
          _
        // Predicated region
        $region17: #{tpu_custom_call.1} parent=11 // pred_check
          %p138 = pneg %p84
        $region18: #{tpu_custom_call.1} parent=11 // pred_check_branch
          %140 = sbr.rel (%p138) target = $region20
        $region19: #{tpu_custom_call.1} parent=11 // pred_region
          _
        $region20: #{tpu_custom_call.1} parent=11 // pred_fallthru
          _
      $region12: #{tpu_custom_call.1} parent=5 // pred_fallthru
        _
      %p141 = scmp.lt.s32.totalorder %s16, 2
      // Predicated region
      $region21: #{tpu_custom_call.1} parent=5 // pred_check
        %p142 = pneg %p141
      $region22: #{tpu_custom_call.1} parent=5 // pred_check_branch
        %144 = sbr.rel (%p142) target = $region24
      $region23: #{tpu_custom_call.1} parent=5 // pred_region
        // Predicated region
        $region25: #{tpu_custom_call.1} parent=23 // pred_check
          %p145 = pneg %p36
        $region26: #{tpu_custom_call.1} parent=23 // pred_check_branch
          %147 = sbr.rel (%p145) target = $region28
        $region27: #{tpu_custom_call.1} parent=23 // pred_region
          %s148 = sand.u32 %s26, 1
          %s149 = scalar_lea.sflag [#allocation3], %s148
          %s150 = sand.u32 %s26, 1
          %s151 = smul.addr %s150, 8
          %s152 = scalar_lea.vmem [#allocation2], %s151
          %s153 = smul.u32 2, %s16
          %s155 = ssub.s32 128, 128
          %156 = vsyncadd %s149, %s155
          %s157 = smul.addr %s153, 64
          %s158 = scalar_lea.hbm %s0, %s157
          %s159 = sshll.u32 %s152, 4
          %s160 = int_to_ptr.vmem [resolvable:$true] %s159
          %165 = dma.hbm_to_vmem [thread:$0]  %s158, 128, %s160, %s149, 64, 64, 4
        $region28: #{tpu_custom_call.1} parent=23 // pred_fallthru
          _
      $region24: #{tpu_custom_call.1} parent=5 // pred_fallthru
        _
      %p166 = scmp.le.s32.totalorder 1, %s16
      %p167 = scmp.lt.s32.totalorder %s16, 3
      %p168 = pnand %p166, %p167
      %p169 = pneg %p168
      // Predicated region
      $region29: #{tpu_custom_call.1} parent=5 // pred_check
        _
      $region30: #{tpu_custom_call.1} parent=5 // pred_check_branch
        %171 = sbr.rel (%p168) target = $region32
      $region31: #{tpu_custom_call.1} parent=5 // pred_region
        %s172 = ssub.s32 %s16, 1
        %s173 = sand.u32 %s29, 1
        %s174 = scalar_lea.sflag [#allocation3], %s173
        %s175 = sand.u32 %s29, 1
        %s176 = smul.addr %s175, 8
        %s177 = scalar_lea.vmem [#allocation2], %s176
        // Predicated region
        $region33: #{tpu_custom_call.1} parent=31 // pred_check
          %p178 = pneg %p42
        $region34: #{tpu_custom_call.1} parent=31 // pred_check_branch
          %180 = sbr.rel (%p178) target = $region36
        $region35: #{tpu_custom_call.1} parent=31 // pred_region
          %181 = dma.done %s174, 128
        $region36: #{tpu_custom_call.1} parent=31 // pred_fallthru
          _
        // Predicated region
        $region37: #{tpu_custom_call.1} parent=31 // pred_check
          %p182 = pneg %p63
        $region38: #{tpu_custom_call.1} parent=31 // pred_check_branch
          %184 = sbr.rel (%p182) target = $region40
        $region39: #{tpu_custom_call.1} parent=31 // pred_region
          %185 = dma.done [#allocation6], 1024
        $region40: #{tpu_custom_call.1} parent=31 // pred_fallthru
          _
        %s186 = sand.u32 %s29, 1
        %s187 = scalar_lea.sflag [#allocation3], %s186
        %s188 = sand.u32 %s29, 1
        %s189 = smul.addr %s188, 8
        %s190 = scalar_lea.vmem [#allocation2], %s189
        %p191 = pneg %p42
        %p192 = pneg %p39
        %p193 = pneg %p63
        %p194 = pneg %p60
        %p195 = pneg %p84
        %p196 = pneg %p81
        %p197 = pneg %p110
        %p198 = pneg %p107
        %s199 = sand.u32 %s97, 1
        %s200 = scalar_lea.sflag [#allocation4], %s199
        %s201 = sand.u32 %s97, 1
        %s202 = smul.addr %s201, 8
        %s203 = scalar_lea.vmem [#allocation7], %s202
        %s204 = smul.u32 2, %s21
        %s205 = smul.u32 2, %s21
        %v207 = vld [vmem:[%s177] sm:$0xf]
        %v208 = vld [vmem:[%s177 + $0x4] sm:$0xf]
        %v209 = vld [vmem:[#allocation5] sm:$0xf]
        %v210 = vld [vmem:[#allocation5 + $0x4] sm:$0xf]
        %v211 = vld [vmem:[#allocation5 + $0x8] sm:$0xf]
        %v212 = vld [vmem:[#allocation5 + $0xc] sm:$0xf]
        %v213 = vld [vmem:[#allocation5 + $0x10] sm:$0xf]
        %v214 = vld [vmem:[#allocation5 + $0x14] sm:$0xf]
        %v215 = vld [vmem:[#allocation5 + $0x18] sm:$0xf]
        %v216 = vld [vmem:[#allocation5 + $0x1c] sm:$0xf]
        %v217 = vld [vmem:[#allocation5 + $0x20] sm:$0xf]
        %v218 = vld [vmem:[#allocation5 + $0x24] sm:$0xf]
        %v219 = vld [vmem:[#allocation5 + $0x28] sm:$0xf]
        %v220 = vld [vmem:[#allocation5 + $0x2c] sm:$0xf]
        %v221 = vld [vmem:[#allocation5 + $0x30] sm:$0xf]
        %v222 = vld [vmem:[#allocation5 + $0x34] sm:$0xf]
        %v223 = vld [vmem:[#allocation5 + $0x38] sm:$0xf]
        %v224 = vld [vmem:[#allocation5 + $0x3c] sm:$0xf]
        %v225 = vld [vmem:[%s2] sm:$0x1]
        %v227 = vlaneseq
        %v228 = vshrl.u32 %v227, 7
        %v229 = vsub.s32 0, %v228
        %v230 = vrot.slane %v225, %v229
        %v234 = vunpack.c.l.b16 %v207
        %v235 = vunpack.c.l.b16 %v208
        %v236 = vpack.c.b16 %v235, %v234
        %v254 = vunpack.c.l.b16 %v209
        %v255 = vunpack.c.l.b16 %v210
        %v256 = vunpack.c.l.b16 %v211
        %v257 = vunpack.c.l.b16 %v212
        %v258 = vunpack.c.l.b16 %v213
        %v259 = vunpack.c.l.b16 %v214
        %v260 = vunpack.c.l.b16 %v215
        %v261 = vunpack.c.l.b16 %v216
        %v262 = vunpack.c.l.b16 %v217
        %v263 = vunpack.c.l.b16 %v218
        %v264 = vunpack.c.l.b16 %v219
        %v265 = vunpack.c.l.b16 %v220
        %v266 = vunpack.c.l.b16 %v221
        %v267 = vunpack.c.l.b16 %v222
        %v268 = vunpack.c.l.b16 %v223
        %v269 = vunpack.c.l.b16 %v224
        %v270 = vpack.c.b16 %v255, %v254
        %v271 = vpack.c.b16 %v257, %v256
        %v272 = vpack.c.b16 %v259, %v258
        %v273 = vpack.c.b16 %v261, %v260
        %v274 = vpack.c.b16 %v263, %v262
        %v275 = vpack.c.b16 %v265, %v264
        %v276 = vpack.c.b16 %v267, %v266
        %v277 = vpack.c.b16 %v269, %v268
        %286 = vmatprep.subr.bf16.mxu0 0
        %287 = vmatpush1.bf16.msra.mxu0 %v270
        %288 = vmatprep.subr.bf16.mxu0 0
        %289 = vmatpush1.bf16.msra.mxu0 %v271
        %290 = vmatprep.subr.bf16.mxu0 0
        %291 = vmatpush1.bf16.msra.mxu0 %v272
        %292 = vmatprep.subr.bf16.mxu0 0
        %293 = vmatpush1.bf16.msra.mxu0 %v273
        %294 = vmatprep.subr.bf16.mxu0 0
        %295 = vmatpush1.bf16.msra.mxu0 %v274
        %296 = vmatprep.subr.bf16.mxu0 0
        %297 = vmatpush1.bf16.msra.mxu0 %v275
        %298 = vmatprep.subr.bf16.mxu0 0
        %299 = vmatpush1.bf16.msra.mxu0 %v276
        %300 = vmatprep.subr.bf16.mxu0 0
        %301 = vmatpush1.bf16.msra.mxu0 %v277
        %302 = vmatprep.subr.bf16.mxu0 0
        %303 = vmatpush1.bf16.msra.mxu0 0
        %304 = vmatprep.subr.bf16.mxu0 0
        %305 = vmatpush1.bf16.msra.mxu0 0
        %306 = vmatprep.subr.bf16.mxu0 0
        %307 = vmatpush1.bf16.msra.mxu0 0
        %308 = vmatprep.subr.bf16.mxu0 0
        %309 = vmatpush1.bf16.msra.mxu0 0
        %310 = vmatprep.subr.bf16.mxu0 0
        %311 = vmatpush1.bf16.msra.mxu0 0
        %312 = vmatprep.subr.bf16.mxu0 0
        %313 = vmatpush1.bf16.msra.mxu0 0
        %314 = vmatprep.subr.bf16.mxu0 0
        %315 = vmatpush1.bf16.msra.mxu0 0
        %316 = vmatprep.subr.bf16.mxu0 0
        %317 = vmatpush1.bf16.msra.mxu0 0
        %318 = vmatprep.mubr.bf16.mxu0 0
        %319 = vmatmul.mubr.bf16.gmra.mrb[0].mxu0 %v236
        %v320 = vpop.f32.mrb[0].mxu0
        %v321 = vadd.f32 %v230, %v320
        %v322 = vpop.f32.mrb[0].mxu0
        %v323 = vpop.f32.mrb[0].mxu0
        %v324 = vadd.f32 %v230, %v323
        %v325 = vpop.f32.mrb[0].mxu0
        %326 = vdwg.mxu0
        %v327 = vpack.c.bf16 %v324, %v321
        %v329 = vunpack.c.l.b16 %v327
        %v330 = vunpack.c.h.b16 %v327
        %v331 = vpack.c.b16 %v329, %v329
        %v332 = vpack.c.b16 %v330, %v330
        %335 = vst [vmem:[%s203] sm:$0xf] %v331
        %336 = vst [vmem:[%s203 + $0x4] sm:$0xf] %v332
        %s337 = sand.u32 %s97, 1
        %s338 = scalar_lea.sflag [#allocation4], %s337
        %s339 = sand.u32 %s97, 1
        %s340 = smul.addr %s339, 8
        %s341 = scalar_lea.vmem [#allocation7], %s340
        // Predicated region
        $region41: #{tpu_custom_call.1} parent=31 // pred_check
          %p342 = pneg %p107
        $region42: #{tpu_custom_call.1} parent=31 // pred_check_branch
          %344 = sbr.rel (%p342) target = $region44
        $region43: #{tpu_custom_call.1} parent=31 // pred_region
          %s345 = smul.u32 2, %s21
          %s347 = ssub.s32 128, 128
          %348 = vsyncadd %s338, %s347
          %s349 = smul.addr %s345, 64
          %s350 = scalar_lea.hbm %s3, %s349
          %s351 = sshll.u32 %s341, 4
          %s352 = int_to_ptr.vmem [resolvable:$true] %s351
          %357 = dma.vmem_to_hbm [thread:$0]  %s352, 128, %s350, %s338, 64, 64, 4
        $region44: #{tpu_custom_call.1} parent=31 // pred_fallthru
          _
      $region32: #{tpu_custom_call.1} parent=5 // pred_fallthru
        _
      %p358 = scmp.le.s32.totalorder 2, %s16
      // Predicated region
      $region45: #{tpu_custom_call.1} parent=5 // pred_check
        %p359 = pneg %p358
      $region46: #{tpu_custom_call.1} parent=5 // pred_check_branch
        %361 = sbr.rel (%p359) target = $region48
      $region47: #{tpu_custom_call.1} parent=5 // pred_region
        %s362 = ssub.s32 %s16, 2
        // Predicated region
        $region49: #{tpu_custom_call.1} parent=47 // pred_check
          %p363 = pneg %p113
        $region50: #{tpu_custom_call.1} parent=47 // pred_check_branch
          %365 = sbr.rel (%p363) target = $region52
        $region51: #{tpu_custom_call.1} parent=47 // pred_region
          %s366 = sand.u32 %s98, 1
          %s367 = scalar_lea.sflag [#allocation4], %s366
          %s368 = sand.u32 %s98, 1
          %s369 = smul.addr %s368, 8
          %s370 = scalar_lea.vmem [#allocation7], %s369
          %371 = dma.done %s367, 128
        $region52: #{tpu_custom_call.1} parent=47 // pred_fallthru
          _
      $region48: #{tpu_custom_call.1} parent=5 // pred_fallthru
        _
    $region6: #{tpu_custom_call.1} parent=1 // loop_footer
      %s20 = sadd.s32 1, %s16
    $region7: #{tpu_custom_call.1} parent=1 // loop_footer_branch
      %15 = sbr.rel target = $region3
    $region8: #{tpu_custom_call.1} parent=1 // loop_exit
      _
    %372 = vsyncpa [#allocation3], 1
    %s373 = scalar_lea.sflag [#allocation3], 1
    %374 = vsyncpa %s373, 1
    %375 = vsyncpa [#allocation6], 1
    %376 = vsyncpa [#allocation4], 1
    %s377 = scalar_lea.sflag [#allocation4], 1
    %378 = vsyncpa %s377, 1

</llo_original>
